<compile_context>
chip_gen: v7x
topology: tpu7x:2x2x1
jax: 0.10.0
libtpu: 0.0.40
codegen_flags: <defaults>
</compile_context>

<pallas_src>
import numpy as np
import jax
import jax.numpy as jnp
from jax.experimental import pallas as pl
from jax.experimental.pallas import tpu as pltpu


# ----------------------------------------------------------------------------
# Explicit copy kernel: direct HBM -> HBM DMA, no VMEM round trip, no tiling.
# ----------------------------------------------------------------------------
def _dma_copy_kernel(lo_hbm_ref, up_hbm_ref, out_lo_hbm_ref, out_up_hbm_ref, sems):
    cp_lo = pltpu.make_async_copy(lo_hbm_ref, out_lo_hbm_ref, sems.at[0])
    cp_up = pltpu.make_async_copy(up_hbm_ref, out_up_hbm_ref, sems.at[1])
    # Issue both DMAs, then wait on both — they run concurrently.
    cp_lo.start()
    cp_up.start()
    cp_lo.wait()
    cp_up.wait()


def _passthrough_copy(lo, up):
    """Identity copy via two direct HBM->HBM DMAs on the original shapes."""
    any_spec = pl.BlockSpec(memory_space=pl.ANY)
    return pl.pallas_call(
        _dma_copy_kernel,
        out_shape=(
            jax.ShapeDtypeStruct(lo.shape, lo.dtype),
            jax.ShapeDtypeStruct(up.shape, up.dtype),
        ),
        in_specs=[any_spec, any_spec],
        out_specs=(any_spec, any_spec),
        scratch_shapes=[pltpu.SemaphoreType.DMA((2,))],
    )(lo, up)


# ----------------------------------------------------------------------------
# Module wrapper
# ----------------------------------------------------------------------------
class InputTransformer:
    """JAX/Pallas port of the PyTorch InputTransformer module.

    forward(lower_bound_prev, upper_bound_prev) returns both bounds unchanged.
    The default path moves zero bytes (returns the inputs directly).  Set
    use_copy_kernel=True to force fresh output buffers via a direct
    HBM->HBM DMA kernel.
    """

    def __init__(self, first_constraint, *, use_copy_kernel=False):
        # Stored exactly as in the PyTorch module's __init__ (unused in forward).
        self.weights_lower = first_constraint["weights_lower"]
        self.weights_upper = first_constraint["weights_upper"]
        self.bias_lower = first_constraint["bias_lower"]
        self.bias_upper = first_constraint["bias_upper"]
        self.lower_bound = first_constraint["bounds_lower"]
        self.upper_bound = first_constraint["bounds_upper"]
        self.shape_in = first_constraint["shape_in"]
        self.shape_out = first_constraint["shape_out"]
        self.use_copy_kernel = use_copy_kernel

    def forward(self, lower_bound_prev, upper_bound_prev):
        lo = jnp.asarray(lower_bound_prev)
        up = jnp.asarray(upper_bound_prev)
        if self.use_copy_kernel:
            return _passthrough_copy(lo, up)
        # Default (perf-review recommendation): the best kernel is no kernel —
        # the forward is an exact identity, so just return the inputs.
        return lo, up

    __call__ = forward


if __name__ == "__main__":
    # Small synthetic shapes consistent with an NCHW input constraint.
    B, C, H, W = 2, 4, 16, 16
    D_in = C * H * W
    D_out = 32

    key = jax.random.PRNGKey(0)
    k_lo, k_gap, kw_lo, kw_up, kb_lo, kb_up = jax.random.split(key, 6)

    # Deterministic synthetic "first constraint" (parameters unused by forward).
    first_constraint = {
        "weights_lower": jax.random.normal(kw_lo, (D_out, D_in), jnp.float32),
        "weights_upper": jax.random.normal(kw_up, (D_out, D_in), jnp.float32),
        "bias_lower": jax.random.normal(kb_lo, (D_out,), jnp.float32),
        "bias_upper": jax.random.normal(kb_up, (D_out,), jnp.float32),
        "bounds_lower": jnp.zeros((B, D_out), jnp.float32),
        "bounds_upper": jnp.ones((B, D_out), jnp.float32),
        "shape_in": (B, C, H, W),
        "shape_out": (B, D_out),
    }

    # Example previous bounds, NCHW layout, lower <= upper.
    lower_prev = jax.random.normal(k_lo, (B, C, H, W), jnp.float32)
    upper_prev = lower_prev + jnp.abs(
        jax.random.normal(k_gap, (B, C, H, W), jnp.float32)
    )

    lower_np = np.asarray(lower_prev)
    upper_np = np.asarray(upper_prev)

    # 1) Explicit HBM->HBM DMA copy kernel, exercised once for coverage.
    copy_module = InputTransformer(first_constraint, use_copy_kernel=True)
    c_lo, c_up = copy_module(lower_prev, upper_prev)
    jax.block_until_ready((c_lo, c_up))
    np.testing.assert_array_equal(np.asarray(c_lo), lower_np)
    np.testing.assert_array_equal(np.asarray(c_up), upper_np)
    assert c_lo.shape == (B, C, H, W) and c_up.shape == (B, C, H, W)
    assert c_lo.dtype == lower_prev.dtype and c_up.dtype == upper_prev.dtype

    # 2) Default zero-overhead pass-through path (no kernel launched).
    module = InputTransformer(first_constraint)
    out_lo, out_up = module(lower_prev, upper_prev)
    jax.block_until_ready((out_lo, out_up))
    np.testing.assert_array_equal(np.asarray(out_lo), lower_np)
    np.testing.assert_array_equal(np.asarray(out_up), upper_np)
    assert out_lo.shape == (B, C, H, W) and out_up.shape == (B, C, H, W)
    assert out_lo.dtype == lower_prev.dtype and out_up.dtype == upper_prev.dtype

    print("KERNEL_OK")
</pallas_src>

<mosaic_0001>
module attributes {stable_mosaic.version = 11 : i64} {
  func.func @_dma_copy_kernel(%arg0: memref<2x4x16x16xf32, #tpu.memory_space<any>>, %arg1: memref<2x4x16x16xf32, #tpu.memory_space<any>>, %arg2: memref<2x4x16x16xf32, #tpu.memory_space<any>>, %arg3: memref<2x4x16x16xf32, #tpu.memory_space<any>>, %arg4: memref<2x!tpu.dma_semaphore, #tpu.memory_space<semaphore_mem>>) attributes {dimension_semantics = [], scalar_prefetch = 0 : i64, scratch_operands = 1 : i64, tpu.core_type = #tpu.core_type<tc>} {
    %c0_i32 = arith.constant 0 : i32
    %0 = tpu.memref_slice %arg4[%c0_i32] : memref<2x!tpu.dma_semaphore, #tpu.memory_space<semaphore_mem>> -> memref<1x!tpu.dma_semaphore, #tpu.memory_space<semaphore_mem>>
    %1 = tpu.memref_squeeze %0 : memref<1x!tpu.dma_semaphore, #tpu.memory_space<semaphore_mem>> -> memref<!tpu.dma_semaphore, #tpu.memory_space<semaphore_mem>>
    tpu.enqueue_dma source(%arg0 : memref<2x4x16x16xf32, #tpu.memory_space<any>>) target(%arg2 : memref<2x4x16x16xf32, #tpu.memory_space<any>>) target_semaphore(%1 : memref<!tpu.dma_semaphore, #tpu.memory_space<semaphore_mem>>)
    %c1_i32 = arith.constant 1 : i32
    %2 = tpu.memref_slice %arg4[%c1_i32] : memref<2x!tpu.dma_semaphore, #tpu.memory_space<semaphore_mem>> -> memref<1x!tpu.dma_semaphore, #tpu.memory_space<semaphore_mem>>
    %3 = tpu.memref_squeeze %2 : memref<1x!tpu.dma_semaphore, #tpu.memory_space<semaphore_mem>> -> memref<!tpu.dma_semaphore, #tpu.memory_space<semaphore_mem>>
    tpu.enqueue_dma source(%arg1 : memref<2x4x16x16xf32, #tpu.memory_space<any>>) target(%arg3 : memref<2x4x16x16xf32, #tpu.memory_space<any>>) target_semaphore(%3 : memref<!tpu.dma_semaphore, #tpu.memory_space<semaphore_mem>>)
    %c0_i32_0 = arith.constant 0 : i32
    %4 = tpu.memref_slice %arg4[%c0_i32_0] : memref<2x!tpu.dma_semaphore, #tpu.memory_space<semaphore_mem>> -> memref<1x!tpu.dma_semaphore, #tpu.memory_space<semaphore_mem>>
    %5 = tpu.memref_squeeze %4 : memref<1x!tpu.dma_semaphore, #tpu.memory_space<semaphore_mem>> -> memref<!tpu.dma_semaphore, #tpu.memory_space<semaphore_mem>>
    tpu.wait_dma2 semaphore(%5 : memref<!tpu.dma_semaphore, #tpu.memory_space<semaphore_mem>>) src(%arg0 : memref<2x4x16x16xf32, #tpu.memory_space<any>>) dst(%arg2 : memref<2x4x16x16xf32, #tpu.memory_space<any>>)
    %c1_i32_1 = arith.constant 1 : i32
    %6 = tpu.memref_slice %arg4[%c1_i32_1] : memref<2x!tpu.dma_semaphore, #tpu.memory_space<semaphore_mem>> -> memref<1x!tpu.dma_semaphore, #tpu.memory_space<semaphore_mem>>
    %7 = tpu.memref_squeeze %6 : memref<1x!tpu.dma_semaphore, #tpu.memory_space<semaphore_mem>> -> memref<!tpu.dma_semaphore, #tpu.memory_space<semaphore_mem>>
    tpu.wait_dma2 semaphore(%7 : memref<!tpu.dma_semaphore, #tpu.memory_space<semaphore_mem>>) src(%arg1 : memref<2x4x16x16xf32, #tpu.memory_space<any>>) dst(%arg3 : memref<2x4x16x16xf32, #tpu.memory_space<any>>)
    return
  }
}

</mosaic_0001>

<llo_original>
// kernel: tpu_custom_call.1
$region0: #{tpu_custom_call.1}
  #allocation0 [shape = 'u32[]', space=smem, size = 0x4, offset = 0x4, fixed_abs, tag = 'smem constant byte address 0x4 - core index']
  #allocation1 [shape = 'u32[144,128]{1,0:T(1,128)}', space=vmem, size = 0x12000, scoped, tag = 'internal scratch']
  #allocation2 [shape = 's32[2]{0}', space=sflag, size = 0x8, scoped, tag = 'scratch operand']
  #allocation3 [shape = 's32[]', space=sflag, size = 0x4, offset = 0, fixed_abs, tag = 'sflag constant byte address 0x0 - dummy sync flag']
  #allocation4 [shape = 'u32[0]{0}', space=smem, size = 0, offset = 0, fixed_abs, tag = 'smem constant byte address 0x0 - null']
  #allocation5 [shape = 's32[]', space=sflag, size = 0x4, offset = 0, fixed_abs, tag = 'sflag constant byte address 0x0 - dummy sync flag']
  #allocation6 [shape = 'u32[0]{0}', space=smem, size = 0, offset = 0, fixed_abs, tag = 'smem constant byte address 0x0 - null']
  %s0 = inlined_call_operand.hbm [shape: f32[2,4,16,16], index: 0, kind: input, shape index: {}]
  %s1 = inlined_call_operand.hbm [shape: f32[2,4,16,16], index: 1, kind: input, shape index: {}]
  %s2 = inlined_call_operand.hbm [shape: f32[2,4,16,16], index: 2, kind: output, shape index: {0}]
  %s3 = inlined_call_operand.hbm [shape: f32[2,4,16,16], index: 3, kind: output, shape index: {1}]
  %4 = xla_tuple %s2, %s3
  %s5 = sld [smem:[#allocation0]]
  $region2: #{tpu_custom_call.1} parent=0
    _
  %s7 = ssub.s32 1, %s5
  %s8 = scalar_select 0, %s7, %s5
  %s10 = sshll.u32 1, 14
  %s11 = sxor.u32 4294967295, %s10
  %s14 = sshll.u32 3, 24
  %s15 = sxor.u32 4294967295, %s14
  %s16 = sand.u32 0, %s15
  %s18 = sor.u32 %s16, 0
  %21 = dma.general %s0, 2048, %s2, [#allocation2], [#allocation3], [#allocation4], %s18, 0
  %s22 = scalar_lea.sflag [#allocation2], 1
  %s24 = sshll.u32 1, 14
  %s25 = sxor.u32 4294967295, %s24
  %s28 = sshll.u32 3, 24
  %s29 = sxor.u32 4294967295, %s28
  %s30 = sand.u32 0, %s29
  %s32 = sor.u32 %s30, 0
  %35 = dma.general %s1, 2048, %s3, %s22, [#allocation5], [#allocation6], %s32, 0
  %s36 = smul.u32 2, 4
  %s37 = smul.u32 %s36, 16
  %s38 = smul.u32 %s37, 1
  %s39 = sshll.u32 %s38, 4
  %40 = dma.done [#allocation2], %s39
  %s41 = sshll.u32 %s38, 4
  %42 = dma.done %s22, %s41
  %43 = vsyncmov [#allocation2]
  %s44 = vpop.sfrf %43
  %p45 = scmp.eq.s32.totalorder %s44, 0
  %p46 = pneg %p45
  %48 = shalt.err (%p46)
  %s49 = scalar_lea.sflag [#allocation2], 1
  %50 = vsyncmov %s49
  %s51 = vpop.sfrf %50
  %p52 = scmp.eq.s32.totalorder %s51, 0
  %p53 = pneg %p52
  %55 = shalt.err (%p53)

</llo_original>
